<compile_context>
chip_gen: v5e
topology: v5e:2x2
jax: 0.10.0
libtpu: 0.0.40
codegen_flags: <defaults>
</compile_context>

<pallas_src>
import jax
import jax.numpy as jnp
from jax.experimental import pallas as pl
from jax.experimental.pallas import tpu as pltpu


# ---------------------------------------------------------------------------
# Kernels
# ---------------------------------------------------------------------------

def _fused_gate_kernel(g_ref, x_ref, wg_ref, wx_ref, bgx_ref, wp_ref, bp_ref,
                       out_ref):
    """Same-resolution path: both 1x1 convs + ReLU + psi + sigmoid + scale."""
    g = g_ref[...]                                                 # (F_g, TP)
    x = x_ref[...]                                                 # (F_l, TP)
    g1 = jnp.dot(wg_ref[...], g, preferred_element_type=jnp.float32)
    x1 = jnp.dot(wx_ref[...], x, preferred_element_type=jnp.float32)
    a = jnp.maximum(g1 + x1 + bgx_ref[...], 0.0)                   # (F_int, TP) f32
    # psi projection on the (otherwise idle) MXU instead of VALU+XLU reduce.
    p = jnp.dot(wp_ref[...], a.astype(wp_ref.dtype),
                preferred_element_type=jnp.float32) + bp_ref[0]    # (1, TP)
    psi = jax.nn.sigmoid(p)
    out_ref[...] = (x * psi).astype(out_ref.dtype)                 # (F_l, TP)


def _conv1x1_kernel(g_ref, w_ref, b_ref, out_ref):
    """1x1 conv (+ folded BN) as a channels-first matmul: (F_int,F_g)@(F_g,TP)."""
    out_ref[...] = (jnp.dot(w_ref[...], g_ref[...],
                            preferred_element_type=jnp.float32)
                    + b_ref[...]).astype(out_ref.dtype)


def _gate_from_g1_kernel(g1_ref, x_ref, wx_ref, bx_ref, wp_ref, bp_ref,
                         out_ref):
    """Resize path: g1 (F_int channels, already conv'd + resized) enters directly."""
    x = x_ref[...]                                                 # (F_l, TP)
    x1 = jnp.dot(wx_ref[...], x, preferred_element_type=jnp.float32)
    a = jnp.maximum(g1_ref[...].astype(jnp.float32) + x1 + bx_ref[...], 0.0)
    p = jnp.dot(wp_ref[...], a.astype(wp_ref.dtype),
                preferred_element_type=jnp.float32) + bp_ref[0]
    psi = jax.nn.sigmoid(p)
    out_ref[...] = (x * psi).astype(out_ref.dtype)


# ---------------------------------------------------------------------------
# Wrapper helpers
# ---------------------------------------------------------------------------

def _vmem_capacity_bytes():
    try:
        info = pltpu.get_tpu_info()
        cap = getattr(info, "vmem_capacity_bytes", None)
        if cap:
            return int(cap)
    except Exception:
        pass
    return 64 * 1024 * 1024          # conservative: v7x per-TensorCore VMEM


def _pick_tile(hw_pad, n_batch, bytes_per_col, *, max_tp=2048):
    """Lane tile (multiple of 128) sized from the per-generation VMEM budget."""
    budget = int(_vmem_capacity_bytes() * 0.40)      # headroom for weights/spill
    tp = budget // max(int(bytes_per_col), 1)
    tp = min(tp, max_tp, hw_pad)
    tp = max(128, (tp // 128) * 128)
    n_pt = pl.cdiv(hw_pad, tp)
    # Megacore (v7x has 2 TCs): keep >= 2 grid steps when possible.
    if n_batch * n_pt < 2 and hw_pad >= 256:
        tp = max(128, ((hw_pad // 2) // 128) * 128)
        n_pt = pl.cdiv(hw_pad, tp)
    return tp, n_pt


def _pad_lanes(a, hw_pad):
    hw = a.shape[-1]
    if hw == hw_pad:
        return a
    return jnp.pad(a, ((0, 0), (0, 0), (0, hw_pad - hw)))


def _run_conv1x1(g3, w, b, compute_dtype, vmem_limit):
    """g3: (N, F_g, HWg) -> (N, F_int, HWg) channels-first 1x1 conv + bias."""
    N, F_g, HWg = g3.shape
    F_int = w.shape[0]
    cd = jnp.dtype(compute_dtype)
    hw_pad = -(-HWg // 128) * 128
    g3p = _pad_lanes(g3, hw_pad)
    tp, n_pt = _pick_tile(hw_pad, N, 2 * (F_g + F_int) * cd.itemsize)

    out = pl.pallas_call(
        _conv1x1_kernel,
        out_shape=jax.ShapeDtypeStruct((N, F_int, hw_pad), compute_dtype),
        grid_spec=pltpu.PrefetchScalarGridSpec(
            num_scalar_prefetch=0,
            grid=(N, n_pt),
            in_specs=[
                pl.BlockSpec((pl.Squeezed(), F_g, tp), lambda b_, p_: (b_, 0, p_)),
                pl.BlockSpec((F_int, F_g), lambda b_, p_: (0, 0)),
                pl.BlockSpec((F_int, 1), lambda b_, p_: (0, 0)),
            ],
            out_specs=pl.BlockSpec((pl.Squeezed(), F_int, tp),
                                   lambda b_, p_: (b_, 0, p_)),
        ),
        compiler_params=pltpu.CompilerParams(
            dimension_semantics=("parallel", "parallel"),
            vmem_limit_bytes=vmem_limit),
        cost_estimate=pl.CostEstimate(
            flops=2 * N * hw_pad * F_int * F_g,
            transcendentals=0,
            bytes_accessed=N * hw_pad * (F_g + F_int) * cd.itemsize),
    )(g3p, w, b)
    return out[:, :, :HWg]


# ---------------------------------------------------------------------------
# Parameters (conv + folded inference-mode BN)
# ---------------------------------------------------------------------------

def init_params(key, F_g, F_l, F_int, eps=1e-5):
    """Deterministic conv + BN params with BN folded into conv weight/bias.

    Returns (wg (F_int,F_g), bg (F_int,1), wx (F_int,F_l), bx (F_int,1),
             wp (1,F_int), bp (1,)) in the channels-first matmul layout.
    """
    ks = jax.random.split(key, 6)
    w_g = jax.random.normal(ks[0], (F_int, F_g), jnp.float32) * 0.1
    b_g = jax.random.normal(ks[1], (F_int,), jnp.float32) * 0.1
    w_x = jax.random.normal(ks[2], (F_int, F_l), jnp.float32) * 0.1
    b_x = jax.random.normal(ks[3], (F_int,), jnp.float32) * 0.1
    w_p = jax.random.normal(ks[4], (1, F_int), jnp.float32) * 0.1
    b_p = jax.random.normal(ks[5], (1,), jnp.float32) * 0.1

    def bn_params(C, offset):
        gamma = 1.0 + 0.05 * jnp.arange(C, dtype=jnp.float32)
        beta = 0.01 * jnp.arange(C, dtype=jnp.float32) + offset
        mean = 0.02 * jnp.arange(C, dtype=jnp.float32)
        var = 1.0 + 0.03 * jnp.arange(C, dtype=jnp.float32)
        return gamma, beta, mean, var

    def fold(w, b, bn):
        gamma, beta, mean, var = bn
        s = gamma / jnp.sqrt(var + eps)
        return w * s[:, None], (b - mean) * s + beta

    wg_f, bg_f = fold(w_g, b_g, bn_params(F_int, 0.0))
    wx_f, bx_f = fold(w_x, b_x, bn_params(F_int, 0.1))
    wp_f, bp_f = fold(w_p, b_p, bn_params(1, 0.2))
    return wg_f, bg_f[:, None], wx_f, bx_f[:, None], wp_f, bp_f


# ---------------------------------------------------------------------------
# Public forward
# ---------------------------------------------------------------------------

def attention_gate(g, x, params, *, compute_dtype=jnp.bfloat16):
    """g: (N, F_g, Hg, Wg), x: (N, F_l, H, W) in NCHW (PyTorch convention)."""
    wg, bg, wx, bx, wp, bp = params
    N, F_g, Hg, Wg_ = g.shape
    _, F_l, H, W = x.shape
    F_int = wg.shape[0]
    out_dtype = x.dtype
    cd = jnp.dtype(compute_dtype)
    ob = jnp.dtype(out_dtype).itemsize

    vmem_limit = int(_vmem_capacity_bytes() * 0.75)

    # Cast weights/activations once; all dots accumulate in f32.
    wg_c = wg.astype(cd)
    wx_c = wx.astype(cd)
    wp_c = wp.astype(cd)

    HW = H * W
    hw_pad = -(-HW // 128) * 128                 # lane-dense (multiple of 128)
    x3 = _pad_lanes(x.reshape(N, F_l, HW).astype(cd), hw_pad)

    common_params = pltpu.CompilerParams(
        dimension_semantics=("parallel", "parallel"),
        vmem_limit_bytes=vmem_limit)

    # TODO(synk): single-buffer the invariant weight operands via
    #             pipeline_mode=pl.Buffered(1) once verified on this JAX build.

    if (Hg, Wg_) != (H, W):
        # W_g conv (+folded BN) at the gate's NATIVE resolution, then resize
        # the F_int-channel g1 (matches PyTorch: conv -> interpolate).
        g3 = g.reshape(N, F_g, Hg * Wg_).astype(cd)
        g1 = _run_conv1x1(g3, wg_c, bg, cd, vmem_limit)        # (N, F_int, Hg*Wg)
        g1 = g1.reshape(N, F_int, Hg, Wg_)
        g1 = jax.image.resize(g1, (N, F_int, H, W), method="bilinear",
                              antialias=False)
        g1p = _pad_lanes(g1.reshape(N, F_int, HW).astype(cd), hw_pad)

        bytes_col = (2 * (F_int + F_l) * cd.itemsize + 2 * F_l * ob
                     + 2 * F_int * 4)
        tp, n_pt = _pick_tile(hw_pad, N, bytes_col)
        out3 = pl.pallas_call(
            _gate_from_g1_kernel,
            out_shape=jax.ShapeDtypeStruct((N, F_l, hw_pad), out_dtype),
            grid_spec=pltpu.PrefetchScalarGridSpec(
                num_scalar_prefetch=0,
                grid=(N, n_pt),
                in_specs=[
                    pl.BlockSpec((pl.Squeezed(), F_int, tp), lambda b_, p_: (b_, 0, p_)),
                    pl.BlockSpec((pl.Squeezed(), F_l, tp), lambda b_, p_: (b_, 0, p_)),
                    pl.BlockSpec((F_int, F_l), lambda b_, p_: (0, 0)),
                    pl.BlockSpec((F_int, 1), lambda b_, p_: (0, 0)),
                    pl.BlockSpec((1, F_int), lambda b_, p_: (0, 0)),
                    pl.BlockSpec(memory_space=pltpu.MemorySpace.SMEM),
                ],
                out_specs=pl.BlockSpec((pl.Squeezed(), F_l, tp),
                                       lambda b_, p_: (b_, 0, p_)),
            ),
            compiler_params=common_params,
            cost_estimate=pl.CostEstimate(
                flops=2 * N * hw_pad * F_int * (F_l + 1),
                transcendentals=N * hw_pad,
                bytes_accessed=N * hw_pad * ((F_int + F_l) * cd.itemsize
                                             + F_l * ob)),
        )(g1p, x3, wx_c, bx, wp_c, bp)
    else:
        # Fully fused single kernel when g and x share the spatial shape.
        bgx = bg + bx
        g3 = _pad_lanes(g.reshape(N, F_g, HW).astype(cd), hw_pad)
        bytes_col = (2 * (F_g + F_l) * cd.itemsize + 2 * F_l * ob
                     + 2 * F_int * 4)
        tp, n_pt = _pick_tile(hw_pad, N, bytes_col)
        out3 = pl.pallas_call(
            _fused_gate_kernel,
            out_shape=jax.ShapeDtypeStruct((N, F_l, hw_pad), out_dtype),
            grid_spec=pltpu.PrefetchScalarGridSpec(
                num_scalar_prefetch=0,
                grid=(N, n_pt),
                in_specs=[
                    pl.BlockSpec((pl.Squeezed(), F_g, tp), lambda b_, p_: (b_, 0, p_)),
                    pl.BlockSpec((pl.Squeezed(), F_l, tp), lambda b_, p_: (b_, 0, p_)),
                    pl.BlockSpec((F_int, F_g), lambda b_, p_: (0, 0)),
                    pl.BlockSpec((F_int, F_l), lambda b_, p_: (0, 0)),
                    pl.BlockSpec((F_int, 1), lambda b_, p_: (0, 0)),
                    pl.BlockSpec((1, F_int), lambda b_, p_: (0, 0)),
                    pl.BlockSpec(memory_space=pltpu.MemorySpace.SMEM),
                ],
                out_specs=pl.BlockSpec((pl.Squeezed(), F_l, tp),
                                       lambda b_, p_: (b_, 0, p_)),
            ),
            compiler_params=common_params,
            cost_estimate=pl.CostEstimate(
                flops=2 * N * hw_pad * F_int * (F_g + F_l + 1),
                transcendentals=N * hw_pad,
                bytes_accessed=N * hw_pad * ((F_g + F_l) * cd.itemsize
                                             + F_l * ob)),
        )(g3, x3, wg_c, wx_c, bgx, wp_c, bp)

    return out3[:, :, :HW].reshape(N, F_l, H, W)


# ---------------------------------------------------------------------------
# Pure-JAX reference (folded-BN AttentionGate, PyTorch op order)
# ---------------------------------------------------------------------------

def _reference(g, x, params):
    wg, bg, wx, bx, wp, bp = params
    N = g.shape[0]
    F_int = wg.shape[0]
    H, W = x.shape[2], x.shape[3]
    g1 = jnp.einsum('oi,nihw->nohw', wg, g) + bg.reshape(1, F_int, 1, 1)
    x1 = jnp.einsum('oi,nihw->nohw', wx, x) + bx.reshape(1, F_int, 1, 1)
    if g1.shape[-2:] != x1.shape[-2:]:
        g1 = jax.image.resize(g1, (N, F_int, H, W), method="bilinear",
                              antialias=False)
    a = jnp.maximum(g1 + x1, 0.0)
    p = jnp.einsum('oi,nihw->nohw', wp, a) + bp.reshape(1, 1, 1, 1)
    psi = jax.nn.sigmoid(p)
    return x * psi


if __name__ == "__main__":
    F_g, F_l, F_int = 8, 4, 32
    N, H, W = 2, 16, 16

    key = jax.random.PRNGKey(0)
    k_g, k_g2, k_x, k_p = jax.random.split(key, 4)
    params = init_params(k_p, F_g, F_l, F_int)

    x = jax.random.normal(k_x, (N, F_l, H, W), jnp.float32)
    g_same = jax.random.normal(k_g, (N, F_g, H, W), jnp.float32)
    g_half = jax.random.normal(k_g2, (N, F_g, H // 2, W // 2), jnp.float32)

    for name, g in (("same-res", g_same), ("gated-2x", g_half)):
        ref = _reference(g, x, params)

        # bf16 MXU operands (f32 accumulation) -> loosened tolerance.
        out_bf16 = jax.block_until_ready(
            attention_gate(g, x, params, compute_dtype=jnp.bfloat16))
        assert out_bf16.shape == x.shape, (out_bf16.shape, x.shape)
        assert jnp.allclose(out_bf16, ref, atol=5e-2, rtol=5e-2), \
            f"{name}: bf16 mismatch vs reference"

        # f32 path for a tight numerical check of the semantics.
        out_f32 = jax.block_until_ready(
            attention_gate(g, x, params, compute_dtype=jnp.float32))
        assert jnp.allclose(out_f32, ref, atol=1e-4, rtol=1e-4), \
            f"{name}: f32 mismatch vs reference"

    print("KERNEL_OK")
</pallas_src>

<mosaic_0001>
module attributes {stable_mosaic.version = 11 : i64} {
  func.func @_fused_gate_kernel(%arg0: i32, %arg1: i32, %arg2: memref<1x8x256xbf16, #tpu.memory_space<vmem>>, %arg3: memref<1x4x256xbf16, #tpu.memory_space<vmem>>, %arg4: memref<32x8xbf16, #tpu.memory_space<vmem>>, %arg5: memref<32x4xbf16, #tpu.memory_space<vmem>>, %arg6: memref<32x1xf32, #tpu.memory_space<vmem>>, %arg7: memref<1x32xbf16, #tpu.memory_space<vmem>>, %arg8: memref<1xf32, #tpu.memory_space<smem>>, %arg9: memref<1x4x256xf32, #tpu.memory_space<vmem>>) attributes {dimension_semantics = [#tpu.dimension_semantics<parallel>, #tpu.dimension_semantics<parallel>], iteration_bounds = array<i64: 2, 1>, scalar_prefetch = 0 : i64, scratch_operands = 0 : i64, tpu.core_type = #tpu.core_type<tc>, window_params = [{transform_indices = @transform_0, window_bounds = array<i64: 1, 8, 256>}, {transform_indices = @transform_1, window_bounds = array<i64: 1, 4, 256>}, {pipeline_mode = #tpu.pipeline_mode<synchronous>, transform_indices = @transform_2, window_bounds = array<i64: 32, 8>}, {pipeline_mode = #tpu.pipeline_mode<synchronous>, transform_indices = @transform_3, window_bounds = array<i64: 32, 4>}, {pipeline_mode = #tpu.pipeline_mode<synchronous>, transform_indices = @transform_4, window_bounds = array<i64: 32, 1>}, {pipeline_mode = #tpu.pipeline_mode<synchronous>, transform_indices = @transform_5, window_bounds = array<i64: 1, 32>}, {transform_indices = @transform_6, window_bounds = array<i64: 1>}, {transform_indices = @transform_7, window_bounds = array<i64: 1, 4, 256>}]} {
    %c0 = arith.constant 0 : index
    %c0_0 = arith.constant 0 : index
    %c0_1 = arith.constant 0 : index
    %0 = vector.load %arg2[%c0, %c0_0, %c0_1] : memref<1x8x256xbf16, #tpu.memory_space<vmem>>, vector<1x8x256xbf16>
    %1 = vector.shape_cast %0 : vector<1x8x256xbf16> to vector<8x256xbf16>
    %c0_2 = arith.constant 0 : index
    %c0_3 = arith.constant 0 : index
    %c0_4 = arith.constant 0 : index
    %2 = vector.load %arg3[%c0_2, %c0_3, %c0_4] : memref<1x4x256xbf16, #tpu.memory_space<vmem>>, vector<1x4x256xbf16>
    %3 = vector.shape_cast %2 : vector<1x4x256xbf16> to vector<4x256xbf16>
    %c0_5 = arith.constant 0 : index
    %c0_6 = arith.constant 0 : index
    %4 = vector.load %arg4[%c0_5, %c0_6] : memref<32x8xbf16, #tpu.memory_space<vmem>>, vector<32x8xbf16>
    %cst = arith.constant dense<0.000000e+00> : vector<32x256xf32>
    %5 = tpu.matmul %4, %1, %cst {dimension_numbers = #tpu.dot_dimension_numbers<[1], [0], [0], [1], [0, 0, 1, 1], [], []>} : vector<32x8xbf16>, vector<8x256xbf16>, vector<32x256xf32> -> vector<32x256xf32>
    %c0_7 = arith.constant 0 : index
    %c0_8 = arith.constant 0 : index
    %6 = vector.load %arg5[%c0_7, %c0_8] : memref<32x4xbf16, #tpu.memory_space<vmem>>, vector<32x4xbf16>
    %cst_9 = arith.constant dense<0.000000e+00> : vector<32x256xf32>
    %7 = tpu.matmul %6, %3, %cst_9 {dimension_numbers = #tpu.dot_dimension_numbers<[1], [0], [0], [1], [0, 0, 1, 1], [], []>} : vector<32x4xbf16>, vector<4x256xbf16>, vector<32x256xf32> -> vector<32x256xf32>
    %8 = arith.addf %5, %7 : vector<32x256xf32>
    %c0_10 = arith.constant 0 : index
    %c0_11 = arith.constant 0 : index
    %9 = vector.load %arg6[%c0_10, %c0_11] : memref<32x1xf32, #tpu.memory_space<vmem>>, vector<32x1xf32>
    %10 = vector.broadcast %9 : vector<32x1xf32> to vector<32x256xf32>
    %11 = arith.addf %8, %10 : vector<32x256xf32>
    %cst_12 = arith.constant 0.000000e+00 : f32
    %12 = vector.broadcast %cst_12 : f32 to vector<32x256xf32>
    %13 = arith.maximumf %11, %12 : vector<32x256xf32>
    %c0_13 = arith.constant 0 : index
    %c0_14 = arith.constant 0 : index
    %14 = vector.load %arg7[%c0_13, %c0_14] : memref<1x32xbf16, #tpu.memory_space<vmem>>, vector<1x32xbf16>
    %15 = arith.truncf %13 : vector<32x256xf32> to vector<32x256xbf16>
    %cst_15 = arith.constant dense<0.000000e+00> : vector<1x256xf32>
    %16 = tpu.matmul %14, %15, %cst_15 {dimension_numbers = #tpu.dot_dimension_numbers<[1], [0], [0], [1], [0, 0, 1, 1], [], []>} : vector<1x32xbf16>, vector<32x256xbf16>, vector<1x256xf32> -> vector<1x256xf32>
    %c0_16 = arith.constant 0 : index
    %17 = memref.load %arg8[%c0_16] : memref<1xf32, #tpu.memory_space<smem>>
    %18 = vector.broadcast %17 : f32 to vector<1x256xf32>
    %19 = arith.addf %16, %18 : vector<1x256xf32>
    %20 = arith.negf %19 : vector<1x256xf32>
    %21 = math.exp %20 : vector<1x256xf32>
    %cst_17 = arith.constant 1.000000e+00 : f32
    %22 = vector.broadcast %cst_17 : f32 to vector<1x256xf32>
    %23 = arith.addf %22, %21 : vector<1x256xf32>
    %24 = arith.divf %22, %23 : vector<1x256xf32>
    %25 = arith.extf %3 : vector<4x256xbf16> to vector<4x256xf32>
    %26 = vector.broadcast %24 : vector<1x256xf32> to vector<4x256xf32>
    %27 = arith.mulf %25, %26 : vector<4x256xf32>
    %c0_18 = arith.constant 0 : index
    %c0_19 = arith.constant 0 : index
    %c0_20 = arith.constant 0 : index
    %28 = vector.load %arg9[%c0_18, %c0_19, %c0_20] : memref<1x4x256xf32, #tpu.memory_space<vmem>>, vector<1x4x256xf32>
    %29 = vector.shape_cast %28 : vector<1x4x256xf32> to vector<4x256xf32>
    %30 = vector.shape_cast %27 : vector<4x256xf32> to vector<1x4x256xf32>
    tpu.vector_store %arg9[%c0_18, %c0_19, %c0_20], %30 {strides = array<i32>} : memref<1x4x256xf32, #tpu.memory_space<vmem>>, vector<1x4x256xf32>,
    return
  }
  func.func @transform_0(%arg0: i32, %arg1: i32) -> (i32, i32, i32) {
    %c0_i32 = arith.constant 0 : i32
    %c0_i32_0 = arith.constant 0 : i32
    return %arg0, %c0_i32, %arg1 : i32, i32, i32
  }
  func.func @transform_1(%arg0: i32, %arg1: i32) -> (i32, i32, i32) {
    %c0_i32 = arith.constant 0 : i32
    %c0_i32_0 = arith.constant 0 : i32
    return %arg0, %c0_i32, %arg1 : i32, i32, i32
  }
  func.func @transform_2(%arg0: i32, %arg1: i32) -> (i32, i32) {
    %c0_i32 = arith.constant 0 : i32
    %c0_i32_0 = arith.constant 0 : i32
    %c0_i32_1 = arith.constant 0 : i32
    return %c0_i32, %c0_i32_0 : i32, i32
  }
  func.func @transform_3(%arg0: i32, %arg1: i32) -> (i32, i32) {
    %c0_i32 = arith.constant 0 : i32
    %c0_i32_0 = arith.constant 0 : i32
    %c0_i32_1 = arith.constant 0 : i32
    return %c0_i32, %c0_i32_0 : i32, i32
  }
  func.func @transform_4(%arg0: i32, %arg1: i32) -> (i32, i32) {
    %c0_i32 = arith.constant 0 : i32
    %c0_i32_0 = arith.constant 0 : i32
    %c0_i32_1 = arith.constant 0 : i32
    return %c0_i32, %c0_i32_0 : i32, i32
  }
  func.func @transform_5(%arg0: i32, %arg1: i32) -> (i32, i32) {
    %c0_i32 = arith.constant 0 : i32
    %c0_i32_0 = arith.constant 0 : i32
    %c0_i32_1 = arith.constant 0 : i32
    return %c0_i32, %c0_i32_0 : i32, i32
  }
  func.func @transform_6(%arg0: i32, %arg1: i32) -> i32 {
    %c0_i32 = arith.constant 0 : i32
    %c0_i32_0 = arith.constant 0 : i32
    return %c0_i32 : i32
  }
  func.func @transform_7(%arg0: i32, %arg1: i32) -> (i32, i32, i32) {
    %c0_i32 = arith.constant 0 : i32
    %c0_i32_0 = arith.constant 0 : i32
    return %arg0, %c0_i32, %arg1 : i32, i32, i32
  }
}

</mosaic_0001>

<llo_original>
// kernel: tpu_custom_call.1
$region0: #{tpu_custom_call.1}
  #allocation0 [shape = 'u32[]', space=smem, size = 0x4, offset = 0x4, fixed_abs, tag = 'smem constant byte address 0x4 - core index']
  #allocation1 [shape = 'u32[72,128]{1,0:T(1,128)}', space=vmem, size = 0x9000, scoped, tag = 'internal scratch']
  #allocation2 [shape = 'f32[1]{0:T(128)S(6)}', space=smem, size = 0x200, scoped, tag = 'scoped memory for tpu_custom_call.1']
  %s0 = inlined_call_operand.vmem [shape: bf16[2,8,256], index: 0, kind: input, shape index: {}]
  %s1 = inlined_call_operand.vmem [shape: bf16[2,4,256], index: 1, kind: input, shape index: {}]
  %s2 = inlined_call_operand.vmem [shape: bf16[32,8], index: 2, kind: input, shape index: {}]
  %s3 = inlined_call_operand.vmem [shape: bf16[32,4], index: 3, kind: input, shape index: {}]
  %s4 = inlined_call_operand.vmem [shape: f32[32,1], index: 4, kind: input, shape index: {}]
  %s5 = inlined_call_operand.vmem [shape: bf16[1,32], index: 5, kind: input, shape index: {}]
  %s6 = inlined_call_operand.<no memory space> [shape: f32[1], index: 6, kind: input, shape index: {}]
  %s7 = inlined_call_operand.hbm [shape: f32[2,4,256], index: 7, kind: output, shape index: {}]
  %s8 = sld [smem:[#allocation0]]
  $region61: #{tpu_custom_call.1} parent=0
    _
  %s10 = ssub.s32 1, %s8
  %s11 = scalar_select 0, %s10, %s8
  %12 = sst [smem:[#allocation2]] %s6
  $region1: #{tpu_custom_call.1} parent=0
    #allocation3 [shape = 'u8[8192]{0}', space=vmem, size = 0x2000, scoped, tag = 'output window, operand 0']
    #allocation4 [shape = 's32[2]{0}', space=sflag, size = 0x8, scoped, tag = 'scoped memory for tpu_custom_call.1']
    %13 = vsyncpa [#allocation4], 0
    %s14 = scalar_lea.sflag [#allocation4], 1
    %15 = vsyncpa %s14, 0
    loop: start=0, step=1, limit=4
    $region2: #{tpu_custom_call.1} parent=1 // loop_pre_header
      _
    $region3: #{tpu_custom_call.1} parent=1 // loop_header
      %s17 = sphi 0, %s21
      %p18 = scmp.ge.s32.totalorder %s17, 4
      %s24 = sphi 0, %s36
      %s25 = sphi 0, %s32
      %s26 = sphi 0, %s24
      %s27 = sphi 0, %s25
      %s28 = sphi 0, %s26
      %s29 = sphi 0, %s27
      %s41 = sphi 0, %s43
      %s44 = sphi 0, %s41
      %s45 = sphi 0, %s44
      %s61 = sphi 0, %s45
      %s69 = sphi 0, %s71
      %s72 = sphi 0, %s69
      %s73 = sphi 0, %s72
      %s89 = sphi 0, %s73
      %s93 = sphi 0, %s93
      %s95 = sphi 0, %s93
      %s96 = sphi 0, %s95
      %s110 = sphi 0, %s96
      %s114 = sphi 0, %s114
      %s116 = sphi 0, %s114
      %s117 = sphi 0, %s116
      %s131 = sphi 0, %s117
      %s135 = sphi 0, %s135
      %s137 = sphi 0, %s135
      %s138 = sphi 0, %s137
      %s152 = sphi 0, %s138
      %s156 = sphi 0, %s156
      %s158 = sphi 0, %s156
      %s159 = sphi 0, %s158
      %s173 = sphi 0, %s159
      %s177 = sphi 0, %s177
      %s179 = sphi 0, %s177
      %s180 = sphi 0, %s179
      %s194 = sphi 0, %s180
      %s202 = sphi 0, %s204
      %s205 = sphi 0, %s202
      %s206 = sphi 0, %s205
      %s222 = sphi 0, %s206
    $region4: #{tpu_custom_call.1} parent=1 // loop_header_branch
      %20 = sbr.rel (%p18) target = $region8
    $region5: #{tpu_custom_call.1} parent=1 // loop_body
      %s22 = ssub.s32 %s17, 1
      %s23 = ssub.s32 %s17, 2
      %s30 = sadd.s32 1, %s25
      %p31 = scmp.ge.s32.totalorder %s30, 1
      %s32 = scalar_select %p31, 0, %s30
      %s33 = sadd.s32 1, %s24
      %s34 = scalar_select %p31, %s33, %s24
      %p35 = scmp.ge.s32.totalorder %s34, 2
      %s36 = scalar_select %p35, 0, %s34
      %s37 = ssub.s32 %s24, %s36
      %s38 = ssub.s32 %s25, %s32
      %s39 = sor.u32 %s37, %s38
      %p40 = scmp.eq.s32.totalorder %s39, 0
      %s42 = sadd.s32 %s41, 1
      %s43 = scalar_select %p40, %s41, %s42
      %p46 = pneg %p40
      %p47 = scmp.eq.s32.totalorder %s17, 1
      %p48 = por %p46, %p47
      %p49 = scmp.ne.s32.totalorder %s41, %s44
      %p50 = scmp.eq.s32.totalorder %s17, 0
      %p51 = por %p49, %p50
      %p52 = scmp.ne.s32.totalorder %s41, %s44
      %p53 = scmp.eq.s32.totalorder %s22, 1
      %p54 = por %p52, %p53
      %p55 = scmp.ne.s32.totalorder %s44, %s45
      %p56 = scmp.eq.s32.totalorder %s22, 0
      %p57 = por %p55, %p56
      %p58 = scmp.ne.s32.totalorder %s44, %s45
      %p59 = scmp.eq.s32.totalorder %s23, 1
      %p60 = por %p58, %p59
      %p62 = scmp.ne.s32.totalorder %s45, %s61
      %p63 = scmp.eq.s32.totalorder %s23, 0
      %p64 = por %p62, %p63
      %s65 = ssub.s32 %s24, %s36
      %s66 = ssub.s32 %s25, %s32
      %s67 = sor.u32 %s65, %s66
      %p68 = scmp.eq.s32.totalorder %s67, 0
      %s70 = sadd.s32 %s69, 1
      %s71 = scalar_select %p68, %s69, %s70
      %p74 = pneg %p68
      %p75 = scmp.eq.s32.totalorder %s17, 1
      %p76 = por %p74, %p75
      %p77 = scmp.ne.s32.totalorder %s69, %s72
      %p78 = scmp.eq.s32.totalorder %s17, 0
      %p79 = por %p77, %p78
      %p80 = scmp.ne.s32.totalorder %s69, %s72
      %p81 = scmp.eq.s32.totalorder %s22, 1
      %p82 = por %p80, %p81
      %p83 = scmp.ne.s32.totalorder %s72, %s73
      %p84 = scmp.eq.s32.totalorder %s22, 0
      %p85 = por %p83, %p84
      %p86 = scmp.ne.s32.totalorder %s72, %s73
      %p87 = scmp.eq.s32.totalorder %s23, 1
      %p88 = por %p86, %p87
      %p90 = scmp.ne.s32.totalorder %s73, %s89
      %p91 = scmp.eq.s32.totalorder %s23, 0
      %p92 = por %p90, %p91
      %s94 = sadd.s32 %s93, 1
      %p97 = scmp.eq.s32.totalorder %s17, 1
      %p98 = scmp.ne.s32.totalorder %s93, %s95
      %p99 = scmp.eq.s32.totalorder %s17, 0
      %p100 = por %p98, %p99
      %p101 = scmp.ne.s32.totalorder %s93, %s95
      %p102 = scmp.eq.s32.totalorder %s22, 1
      %p103 = por %p101, %p102
      %p104 = scmp.ne.s32.totalorder %s95, %s96
      %p105 = scmp.eq.s32.totalorder %s22, 0
      %p106 = por %p104, %p105
      %p107 = scmp.ne.s32.totalorder %s95, %s96
      %p108 = scmp.eq.s32.totalorder %s23, 1
      %p109 = por %p107, %p108
      %p111 = scmp.ne.s32.totalorder %s96, %s110
      %p112 = scmp.eq.s32.totalorder %s23, 0
      %p113 = por %p111, %p112
      %s115 = sadd.s32 %s114, 1
      %p118 = scmp.eq.s32.totalorder %s17, 1
      %p119 = scmp.ne.s32.totalorder %s114, %s116
      %p120 = scmp.eq.s32.totalorder %s17, 0
      %p121 = por %p119, %p120
      %p122 = scmp.ne.s32.totalorder %s114, %s116
      %p123 = scmp.eq.s32.totalorder %s22, 1
      %p124 = por %p122, %p123
      %p125 = scmp.ne.s32.totalorder %s116, %s117
      %p126 = scmp.eq.s32.totalorder %s22, 0
      %p127 = por %p125, %p126
      %p128 = scmp.ne.s32.totalorder %s116, %s117
      %p129 = scmp.eq.s32.totalorder %s23, 1
      %p130 = por %p128, %p129
      %p132 = scmp.ne.s32.totalorder %s117, %s131
      %p133 = scmp.eq.s32.totalorder %s23, 0
      %p134 = por %p132, %p133
      %s136 = sadd.s32 %s135, 1
      %p139 = scmp.eq.s32.totalorder %s17, 1
      %p140 = scmp.ne.s32.totalorder %s135, %s137
      %p141 = scmp.eq.s32.totalorder %s17, 0
      %p142 = por %p140, %p141
      %p143 = scmp.ne.s32.totalorder %s135, %s137
      %p144 = scmp.eq.s32.totalorder %s22, 1
      %p145 = por %p143, %p144
      %p146 = scmp.ne.s32.totalorder %s137, %s138
      %p147 = scmp.eq.s32.totalorder %s22, 0
      %p148 = por %p146, %p147
      %p149 = scmp.ne.s32.totalorder %s137, %s138
      %p150 = scmp.eq.s32.totalorder %s23, 1
      %p151 = por %p149, %p150
      %p153 = scmp.ne.s32.totalorder %s138, %s152
      %p154 = scmp.eq.s32.totalorder %s23, 0
      %p155 = por %p153, %p154
      %s157 = sadd.s32 %s156, 1
      %p160 = scmp.eq.s32.totalorder %s17, 1
      %p161 = scmp.ne.s32.totalorder %s156, %s158
      %p162 = scmp.eq.s32.totalorder %s17, 0
      %p163 = por %p161, %p162
      %p164 = scmp.ne.s32.totalorder %s156, %s158
      %p165 = scmp.eq.s32.totalorder %s22, 1
      %p166 = por %p164, %p165
      %p167 = scmp.ne.s32.totalorder %s158, %s159
      %p168 = scmp.eq.s32.totalorder %s22, 0
      %p169 = por %p167, %p168
      %p170 = scmp.ne.s32.totalorder %s158, %s159
      %p171 = scmp.eq.s32.totalorder %s23, 1
      %p172 = por %p170, %p171
      %p174 = scmp.ne.s32.totalorder %s159, %s173
      %p175 = scmp.eq.s32.totalorder %s23, 0
      %p176 = por %p174, %p175
      %s178 = sadd.s32 %s177, 1
      %p181 = scmp.eq.s32.totalorder %s17, 1
      %p182 = scmp.ne.s32.totalorder %s177, %s179
      %p183 = scmp.eq.s32.totalorder %s17, 0
      %p184 = por %p182, %p183
      %p185 = scmp.ne.s32.totalorder %s177, %s179
      %p186 = scmp.eq.s32.totalorder %s22, 1
      %p187 = por %p185, %p186
      %p188 = scmp.ne.s32.totalorder %s179, %s180
      %p189 = scmp.eq.s32.totalorder %s22, 0
      %p190 = por %p188, %p189
      %p191 = scmp.ne.s32.totalorder %s179, %s180
      %p192 = scmp.eq.s32.totalorder %s23, 1
      %p193 = por %p191, %p192
      %p195 = scmp.ne.s32.totalorder %s180, %s194
      %p196 = scmp.eq.s32.totalorder %s23, 0
      %p197 = por %p195, %p196
      %s198 = ssub.s32 %s24, %s36
      %s199 = ssub.s32 %s25, %s32
      %s200 = sor.u32 %s198, %s199
      %p201 = scmp.eq.s32.totalorder %s200, 0
      %s203 = sadd.s32 %s202, 1
      %s204 = scalar_select %p201, %s202, %s203
      %p207 = pneg %p201
      %p208 = scmp.eq.s32.totalorder %s17, 1
      %p209 = por %p207, %p208
      %p210 = scmp.ne.s32.totalorder %s202, %s205
      %p211 = scmp.eq.s32.totalorder %s17, 0
      %p212 = por %p210, %p211
      %p213 = scmp.ne.s32.totalorder %s202, %s205
      %p214 = scmp.eq.s32.totalorder %s22, 1
      %p215 = por %p213, %p214
      %p216 = scmp.ne.s32.totalorder %s205, %s206
      %p217 = scmp.eq.s32.totalorder %s22, 0
      %p218 = por %p216, %p217
      %p219 = scmp.ne.s32.totalorder %s205, %s206
      %p220 = scmp.eq.s32.totalorder %s23, 1
      %p221 = por %p219, %p220
      %p223 = scmp.ne.s32.totalorder %s206, %s222
      %p224 = scmp.eq.s32.totalorder %s23, 0
      %p225 = por %p223, %p224
      %p226 = scmp.le.s32.totalorder 1, %s17
      %p227 = scmp.lt.s32.totalorder %s17, 3
      %p228 = pnand %p226, %p227
      %p229 = pneg %p228
      // Predicated region
      $region9: #{tpu_custom_call.1} parent=5 // pred_check
        _
      $region10: #{tpu_custom_call.1} parent=5 // pred_check_branch
        %231 = sbr.rel (%p228) target = $region12
      $region11: #{tpu_custom_call.1} parent=5 // pred_region
        %s232 = ssub.s32 %s17, 1
        // Predicated region
        $region13: #{tpu_custom_call.1} parent=11 // pred_check
          %p233 = pneg %p106
        $region14: #{tpu_custom_call.1} parent=11 // pred_check_branch
          %235 = sbr.rel (%p233) target = $region16
        $region15: #{tpu_custom_call.1} parent=11 // pred_region
          _
        $region16: #{tpu_custom_call.1} parent=11 // pred_fallthru
          _
        // Predicated region
        $region17: #{tpu_custom_call.1} parent=11 // pred_check
          %p236 = pneg %p127
        $region18: #{tpu_custom_call.1} parent=11 // pred_check_branch
          %238 = sbr.rel (%p236) target = $region20
        $region19: #{tpu_custom_call.1} parent=11 // pred_region
          _
        $region20: #{tpu_custom_call.1} parent=11 // pred_fallthru
          _
        // Predicated region
        $region21: #{tpu_custom_call.1} parent=11 // pred_check
          %p239 = pneg %p148
        $region22: #{tpu_custom_call.1} parent=11 // pred_check_branch
          %241 = sbr.rel (%p239) target = $region24
        $region23: #{tpu_custom_call.1} parent=11 // pred_region
          _
        $region24: #{tpu_custom_call.1} parent=11 // pred_fallthru
          _
        // Predicated region
        $region25: #{tpu_custom_call.1} parent=11 // pred_check
          %p242 = pneg %p169
        $region26: #{tpu_custom_call.1} parent=11 // pred_check_branch
          %244 = sbr.rel (%p242) target = $region28
        $region27: #{tpu_custom_call.1} parent=11 // pred_region
          _
        $region28: #{tpu_custom_call.1} parent=11 // pred_fallthru
          _
        // Predicated region
        $region29: #{tpu_custom_call.1} parent=11 // pred_check
          %p245 = pneg %p190
        $region30: #{tpu_custom_call.1} parent=11 // pred_check_branch
          %247 = sbr.rel (%p245) target = $region32
        $region31: #{tpu_custom_call.1} parent=11 // pred_region
          _
        $region32: #{tpu_custom_call.1} parent=11 // pred_fallthru
          _
      $region12: #{tpu_custom_call.1} parent=5 // pred_fallthru
        _
      %p248 = scmp.lt.s32.totalorder %s17, 2
      // Predicated region
      $region33: #{tpu_custom_call.1} parent=5 // pred_check
        %p249 = pneg %p248
      $region34: #{tpu_custom_call.1} parent=5 // pred_check_branch
        %251 = sbr.rel (%p249) target = $region36
      $region35: #{tpu_custom_call.1} parent=5 // pred_region
        // Predicated region
        $region37: #{tpu_custom_call.1} parent=35 // pred_check
          %p252 = pneg %p51
        $region38: #{tpu_custom_call.1} parent=35 // pred_check_branch
          %254 = sbr.rel (%p252) target = $region40
        $region39: #{tpu_custom_call.1} parent=35 // pred_region
          %s255 = smul.u32 2, %s25
          %p256 = scmp.lt.s32.totalorder %s24, 1
          %s257 = scalar_select %p256, %s24, 1
          %p258 = scmp.lt.s32.totalorder %s255, 1
          %s259 = scalar_select %p258, %s255, 1
          %s260 = smul.addr %s257, 2
          %s261 = sadd.s32 %s259, %s260
          %s262 = smul.addr %s261, 4
          %s263 = scalar_lea.vmem %s0, %s262
          %s264 = smul.u32 2, %s25
        $region40: #{tpu_custom_call.1} parent=35 // pred_fallthru
          _
        // Predicated region
        $region41: #{tpu_custom_call.1} parent=35 // pred_check
          %p265 = pneg %p79
        $region42: #{tpu_custom_call.1} parent=35 // pred_check_branch
          %267 = sbr.rel (%p265) target = $region44
        $region43: #{tpu_custom_call.1} parent=35 // pred_region
          %s268 = smul.u32 2, %s25
          %p269 = scmp.lt.s32.totalorder %s24, 1
          %s270 = scalar_select %p269, %s24, 1
          %p271 = scmp.lt.s32.totalorder %s268, 1
          %s272 = scalar_select %p271, %s268, 1
          %s273 = smul.addr %s270, 2
          %s274 = sadd.s32 %s272, %s273
          %s275 = smul.addr %s274, 2
          %s276 = scalar_lea.vmem %s1, %s275
          %s277 = smul.u32 2, %s25
        $region44: #{tpu_custom_call.1} parent=35 // pred_fallthru
          _
      $region36: #{tpu_custom_call.1} parent=5 // pred_fallthru
        _
      %p278 = scmp.le.s32.totalorder 1, %s17
      %p279 = scmp.lt.s32.totalorder %s17, 3
      %p280 = pnand %p278, %p279
      %p281 = pneg %p280
      // Predicated region
      $region45: #{tpu_custom_call.1} parent=5 // pred_check
        _
      $region46: #{tpu_custom_call.1} parent=5 // pred_check_branch
        %283 = sbr.rel (%p280) target = $region48
      $region47: #{tpu_custom_call.1} parent=5 // pred_region
        %s284 = ssub.s32 %s17, 1
        %s285 = smul.u32 2, %s27
        %p286 = scmp.lt.s32.totalorder %s26, 1
        %s287 = scalar_select %p286, %s26, 1
        %p288 = scmp.lt.s32.totalorder %s285, 1
        %s289 = scalar_select %p288, %s285, 1
        %s290 = smul.addr %s287, 2
        %s291 = sadd.s32 %s289, %s290
        %s292 = smul.addr %s291, 4
        %s293 = scalar_lea.vmem %s0, %s292
        %p294 = pneg %p57
        %p295 = pneg %p54
        %s296 = smul.u32 2, %s27
        %p297 = scmp.lt.s32.totalorder %s26, 1
        %s298 = scalar_select %p297, %s26, 1
        %p299 = scmp.lt.s32.totalorder %s296, 1
        %s300 = scalar_select %p299, %s296, 1
        %s301 = smul.addr %s298, 2
        %s302 = sadd.s32 %s300, %s301
        %s303 = smul.addr %s302, 2
        %s304 = scalar_lea.vmem %s1, %s303
        %p305 = pneg %p85
        %p306 = pneg %p82
        %p307 = pneg %p106
        %p308 = pneg %p103
        %p309 = pneg %p127
        %p310 = pneg %p124
        %p311 = pneg %p148
        %p312 = pneg %p145
        %p313 = pneg %p169
        %p314 = pneg %p166
        %p315 = pneg %p190
        %p316 = pneg %p187
        %p317 = pneg %p218
        %p318 = pneg %p215
        %s319 = sand.u32 %s205, 1
        %s320 = scalar_lea.sflag [#allocation4], %s319
        %s321 = sand.u32 %s205, 1
        %s322 = smul.addr %s321, 8
        %s323 = scalar_lea.vmem [#allocation3], %s322
        %s324 = smul.u32 2, %s27
        %p325 = scmp.lt.s32.totalorder %s26, 1
        %s326 = scalar_select %p325, %s26, 1
        %p327 = scmp.lt.s32.totalorder %s324, 1
        %s328 = scalar_select %p327, %s324, 1
        %s329 = smul.addr %s326, 2
        %s330 = sadd.s32 %s328, %s329
        %s331 = smul.addr %s330, 4
        %s332 = scalar_lea.vmem %s0, %s331
        %s333 = smul.u32 2, %s27
        %s334 = smul.u32 2, %s27
        %p335 = scmp.lt.s32.totalorder %s26, 1
        %s336 = scalar_select %p335, %s26, 1
        %p337 = scmp.lt.s32.totalorder %s334, 1
        %s338 = scalar_select %p337, %s334, 1
        %s339 = smul.addr %s336, 2
        %s340 = sadd.s32 %s338, %s339
        %s341 = smul.addr %s340, 2
        %s342 = scalar_lea.vmem %s1, %s341
        %s343 = smul.u32 2, %s27
        %s344 = smul.u32 2, %s27
        %v346 = vld [vmem:[%s332] sm:$0xff]
        %v347 = vld [vmem:[%s342] sm:$0xf]
        %v348 = vld [vmem:[%s2] sm:$0xf]
        %v349 = vld [vmem:[%s2 + $0x4] sm:$0xf]
        %v350 = vld [vmem:[%s2 + $0x8] sm:$0xf]
        %v351 = vld [vmem:[%s2 + $0xc] sm:$0xf]
        %v352 = vld [vmem:[%s3] sm:$0xf]
        %v353 = vld [vmem:[%s3 + $0x4] sm:$0xf]
        %v354 = vld [vmem:[%s3 + $0x8] sm:$0xf]
        %v355 = vld [vmem:[%s3 + $0xc] sm:$0xf]
        %v360 = vunpack.c.l.b16 %v352
        %v361 = vunpack.c.l.b16 %v353
        %v362 = vunpack.c.l.b16 %v354
        %v363 = vunpack.c.l.b16 %v355
        %v364 = vpack.c.b16 %v361, %v360
        %v365 = vpack.c.b16 %v363, %v362
        %367 = vst [vmem:[#allocation1] ss:$4 sm:$0xff] %v347
        %v368 = vld.sshfl [vmem:[#allocation1] sm:$0xff pattern:$0x73625140]
        %v369 = vld.sshfl [vmem:[#allocation1 + $0x8] sm:$0xff pattern:$0x73625140]
        %vm370 = vcmask 31744
        %v372 = vsel %vm370, %v364, 0
        %v375 = vsel %vm370, %v365, 0
        %vm377 = vcmask 1041408
        %v378 = vsel %vm377, %v368, 0
        %v380 = vsel %vm377, %v369, 0
        %382 = vmatpush.bf16.msra.mxu0 0
        %383 = vmatpush.bf16.msra.mxu0 0
        %384 = vmatpush.bf16.msra.mxu0 0
        %385 = vmatpush.bf16.msra.mxu0 0
        %386 = vmatpush.bf16.msra.mxu0 0
        %387 = vmatpush.bf16.msra.mxu0 0
        %388 = vmatpush.bf16.msra.mxu0 0
        %389 = vmatpush.bf16.msra.mxu0 %v378
        %390 = vmatmul.bf16.gmra.mxu0 %v372
        %v391 = vpop.f32.mrf.mxu0
        %v392 = vadd.f32 0.0, %v391
        %v393 = vpop.f32.mrf.mxu0
        %v394 = vadd.f32 0.0, %v393
        %395 = vmatmul.bf16.gmra.mxu0 %v375
        %v396 = vpop.f32.mrf.mxu0
        %v397 = vadd.f32 0.0, %v396
        %v398 = vpop.f32.mrf.mxu0
        %v399 = vadd.f32 0.0, %v398
        %400 = vdwg.mxu0
        %401 = vmatpush.bf16.msra.mxu0 0
        %402 = vmatpush.bf16.msra.mxu0 0
        %403 = vmatpush.bf16.msra.mxu0 0
        %404 = vmatpush.bf16.msra.mxu0 0
        %405 = vmatpush.bf16.msra.mxu0 0
        %406 = vmatpush.bf16.msra.mxu0 0
        %407 = vmatpush.bf16.msra.mxu0 0
        %408 = vmatpush.bf16.msra.mxu0 %v380
        %409 = vmatmul.bf16.gmra.mxu0 %v372
        %v410 = vpop.f32.mrf.mxu0
        %v411 = vadd.f32 0.0, %v410
        %v412 = vpop.f32.mrf.mxu0
        %v413 = vadd.f32 0.0, %v412
        %414 = vmatmul.bf16.gmra.mxu0 %v375
        %v415 = vpop.f32.mrf.mxu0
        %v416 = vadd.f32 0.0, %v415
        %v417 = vpop.f32.mrf.mxu0
        %v418 = vadd.f32 0.0, %v417
        %419 = vdwg.mxu0
        %v424 = vunpack.c.l.b16 %v348
        %v425 = vunpack.c.l.b16 %v349
        %v426 = vunpack.c.l.b16 %v350
        %v427 = vunpack.c.l.b16 %v351
        %v428 = vpack.c.b16 %v425, %v424
        %v429 = vpack.c.b16 %v427, %v426
        %v431 = vunpack.c.l.b16 %v346
        %v432 = vunpack.c.h.b16 %v346
        %v433 = vpack.c.b16 %v431, %v431
        %v434 = vpack.c.b16 %v432, %v432
        %vm435 = vcmask 64512
        %v437 = vsel %vm435, %v428, 0
        %v440 = vsel %vm435, %v429, 0
        %vm442 = vcmask 1043456
        %v444 = vsel %vm442, %v433, 0
        %v447 = vsel %vm442, %v434, 0
        %449 = vmatpush.bf16.msra.mxu0 0
        %450 = vmatpush.bf16.msra.mxu0 0
        %451 = vmatpush.bf16.msra.mxu0 0
        %452 = vmatpush.bf16.msra.mxu0 0
        %453 = vmatpush.bf16.msra.mxu0 0
        %454 = vmatpush.bf16.msra.mxu0 0
        %455 = vmatpush.bf16.msra.mxu0 0
        %456 = vmatpush.bf16.msra.mxu0 %v444
        %457 = vmatmul.bf16.gmra.mxu0 %v437
        %v458 = vpop.f32.mrf.mxu0
        %v459 = vadd.f32 %v392, %v458
        %v460 = vpop.f32.mrf.mxu0
        %v461 = vadd.f32 %v394, %v460
        %462 = vmatmul.bf16.gmra.mxu0 %v440
        %v463 = vpop.f32.mrf.mxu0
        %v464 = vadd.f32 %v397, %v463
        %v465 = vpop.f32.mrf.mxu0
        %v466 = vadd.f32 %v399, %v465
        %467 = vdwg.mxu0
        %468 = vmatpush.bf16.msra.mxu0 0
        %469 = vmatpush.bf16.msra.mxu0 0
        %470 = vmatpush.bf16.msra.mxu0 0
        %471 = vmatpush.bf16.msra.mxu0 0
        %472 = vmatpush.bf16.msra.mxu0 0
        %473 = vmatpush.bf16.msra.mxu0 0
        %474 = vmatpush.bf16.msra.mxu0 0
        %475 = vmatpush.bf16.msra.mxu0 %v447
        %476 = vmatmul.bf16.gmra.mxu0 %v437
        %v477 = vpop.f32.mrf.mxu0
        %v478 = vadd.f32 %v411, %v477
        %v479 = vpop.f32.mrf.mxu0
        %v480 = vadd.f32 %v413, %v479
        %481 = vmatmul.bf16.gmra.mxu0 %v440
        %v482 = vpop.f32.mrf.mxu0
        %v483 = vadd.f32 %v416, %v482
        %v484 = vpop.f32.mrf.mxu0
        %v485 = vadd.f32 %v418, %v484
        %486 = vdwg.mxu0
        %v487 = vld [vmem:[%s4] sm:$0xff]
        %v488 = vld [vmem:[%s4 + $0x8] sm:$0xff]
        %v489 = vld [vmem:[%s4 + $0x10] sm:$0xff]
        %v490 = vld [vmem:[%s4 + $0x18] sm:$0xff]
        %492 = vset.pattern.permute.xlu0 0
        %493 = vperm.xlu0 %492, %v487
        %v494 = vpop.permute.xlu0 %493
        %497 = vset.pattern.permute.xlu0 0
        %498 = vperm.xlu0 %497, %v488
        %v499 = vpop.permute.xlu0 %498
        %502 = vset.pattern.permute.xlu0 0
        %503 = vperm.xlu0 %502, %v489
        %v504 = vpop.permute.xlu0 %503
        %507 = vset.pattern.permute.xlu0 0
        %508 = vperm.xlu0 %507, %v490
        %v509 = vpop.permute.xlu0 %508
        %v511 = vadd.f32 %v459, %v494
        %v512 = vadd.f32 %v478, %v494
        %v513 = vadd.f32 %v461, %v499
        %v514 = vadd.f32 %v480, %v499
        %v515 = vadd.f32 %v464, %v504
        %v516 = vadd.f32 %v483, %v504
        %v517 = vadd.f32 %v466, %v509
        %v518 = vadd.f32 %v485, %v509
        %v519 = vmax.f32 %v511, 0.0
        %v520 = vmax.f32 %v512, 0.0
        %v521 = vmax.f32 %v513, 0.0
        %v522 = vmax.f32 %v514, 0.0
        %v523 = vmax.f32 %v515, 0.0
        %v524 = vmax.f32 %v516, 0.0
        %v525 = vmax.f32 %v517, 0.0
        %v526 = vmax.f32 %v518, 0.0
        %v527 = vld [vmem:[%s5] sm:$0x1]
        %v528 = vpack.c.bf16 %v521, %v519
        %v529 = vpack.c.bf16 %v522, %v520
        %v530 = vpack.c.bf16 %v525, %v523
        %v531 = vpack.c.bf16 %v526, %v524
        %s532 = sld [smem:[#allocation2]]
        %v533 = vstv %s532
        %vm534 = vcmask 261120
        %v536 = vsel %vm534, %v527, 0
        %538 = vmatpush.bf16.msra.mxu0 0
        %539 = vmatpush.bf16.msra.mxu0 0
        %540 = vmatpush.bf16.msra.mxu0 0
        %541 = vmatpush.bf16.msra.mxu0 0
        %542 = vmatpush.bf16.msra.mxu0 0
        %543 = vmatpush.bf16.msra.mxu0 0
        %544 = vmatpush.bf16.msra.mxu0 %v530
        %545 = vmatpush.bf16.msra.mxu0 %v528
        %546 = vmatmul.bf16.gmra.mxu0 %v536
        %v547 = vpop.f32.mrf.mxu0
        %v548 = vadd.f32 %v533, %v547
        %v549 = vpop.f32.mrf.mxu0
        %550 = vdwg.mxu0
        %551 = vmatpush.bf16.msra.mxu0 0
        %552 = vmatpush.bf16.msra.mxu0 0
        %553 = vmatpush.bf16.msra.mxu0 0
        %554 = vmatpush.bf16.msra.mxu0 0
        %555 = vmatpush.bf16.msra.mxu0 0
        %556 = vmatpush.bf16.msra.mxu0 0
        %557 = vmatpush.bf16.msra.mxu0 %v531
        %558 = vmatpush.bf16.msra.mxu0 %v529
        %559 = vmatmul.bf16.gmra.mxu0 %v536
        %v560 = vpop.f32.mrf.mxu0
        %v561 = vadd.f32 %v533, %v560
        %v562 = vpop.f32.mrf.mxu0
        %563 = vdwg.mxu0
        %v564 = vxor.u32 %v548, 2147483648
        %v565 = vxor.u32 %v561, 2147483648
        %v566 = vmul.f32 %v564, 1.442695
        %v567 = vpow.pop %v566
        %v568 = vmul.f32 %v565, 1.442695
        %v569 = vpow.pop %v568
        %v570 = vadd.f32 %v567, 1.0
        %v571 = vadd.f32 %v569, 1.0
        %v572 = vrcp.pop %v570
        %v573 = vmul.f32 %v570, %v572
        %v574 = vsub.f32 1.0, %v573
        %v575 = vmul.f32 %v572, %v574
        %v576 = vadd.f32 %v572, %v575
        %vm577 = vweird.f32 %v570
        %vm578 = vweird.f32 %v572
        %vm579 = vmor %vm577, %vm578
        %v580 = vsel %vm579, %v572, %v576
        %v581 = vand.u32 2147483647, %v570
        %vm582 = vcmp.eq.f32.partialorder %v581, 8.507059e+37
        %v583 = vand.u32 %v570, 2147483648
        %v584 = vor.u32 1.1754944e-38, %v583
        %v585 = vsel %vm582, %v584, %v580
        %v586 = vmul.f32 1.0, %v585
        %v587 = vrcp.pop %v571
        %v588 = vmul.f32 %v571, %v587
        %v589 = vsub.f32 1.0, %v588
        %v590 = vmul.f32 %v587, %v589
        %v591 = vadd.f32 %v587, %v590
        %vm592 = vweird.f32 %v571
        %vm593 = vweird.f32 %v587
        %vm594 = vmor %vm592, %vm593
        %v595 = vsel %vm594, %v587, %v591
        %v596 = vand.u32 2147483647, %v571
        %vm597 = vcmp.eq.f32.partialorder %v596, 8.507059e+37
        %v598 = vand.u32 %v571, 2147483648
        %v599 = vor.u32 1.1754944e-38, %v598
        %v600 = vsel %vm597, %v599, %v595
        %v601 = vmul.f32 1.0, %v600
        %v602 = vunpack.c.l.bf16 %v347
        %v603 = vperm.slane %v586, 0
        %v604 = vperm.slane %v601, 0
        %v607 = vrot.slane %v604, 4
        %v608 = vsel %vm442, %v603, %v607
        %v610 = vmul.f32 %v602, %v608
        %611 = vst [vmem:[%s323] sm:$0xff] %v610
        %s612 = sand.u32 %s205, 1
        %s613 = scalar_lea.sflag [#allocation4], %s612
        %s614 = sand.u32 %s205, 1
        %s615 = smul.addr %s614, 8
        %s616 = scalar_lea.vmem [#allocation3], %s615
        // Predicated region
        $region49: #{tpu_custom_call.1} parent=47 // pred_check
          %p617 = pneg %p215
        $region50: #{tpu_custom_call.1} parent=47 // pred_check_branch
          %619 = sbr.rel (%p617) target = $region52
        $region51: #{tpu_custom_call.1} parent=47 // pred_region
          %s620 = smul.u32 2, %s27
          %622 = vsyncadd %s613, 0
          %s623 = smul.addr %s26, 2
          %s624 = sadd.s32 %s620, %s623
          %s625 = smul.addr %s624, 4
          %s626 = scalar_lea.hbm %s7, %s625
          %s628 = sshll.u32 %s616, 4
          %s629 = int_to_ptr.vmem [resolvable:$true] %s628
          %s630 = sshll.u32 %s626, 4
          %s631 = int_to_ptr.hbm [resolvable:$true] %s630
          %633 = dma.vmem_to_hbm [thread:$0]  %s629, 128, %s631, %s613
        $region52: #{tpu_custom_call.1} parent=47 // pred_fallthru
          _
      $region48: #{tpu_custom_call.1} parent=5 // pred_fallthru
        _
      %p634 = scmp.le.s32.totalorder 2, %s17
      // Predicated region
      $region53: #{tpu_custom_call.1} parent=5 // pred_check
        %p635 = pneg %p634
      $region54: #{tpu_custom_call.1} parent=5 // pred_check_branch
        %637 = sbr.rel (%p635) target = $region56
      $region55: #{tpu_custom_call.1} parent=5 // pred_region
        %s638 = ssub.s32 %s17, 2
        // Predicated region
        $region57: #{tpu_custom_call.1} parent=55 // pred_check
          %p639 = pneg %p221
        $region58: #{tpu_custom_call.1} parent=55 // pred_check_branch
          %641 = sbr.rel (%p639) target = $region60
        $region59: #{tpu_custom_call.1} parent=55 // pred_region
          %s642 = sand.u32 %s206, 1
          %s643 = scalar_lea.sflag [#allocation4], %s642
          %s644 = sand.u32 %s206, 1
          %s645 = smul.addr %s644, 8
          %s646 = scalar_lea.vmem [#allocation3], %s645
          %648 = dma.done %s643, 128
        $region60: #{tpu_custom_call.1} parent=55 // pred_fallthru
          _
      $region56: #{tpu_custom_call.1} parent=5 // pred_fallthru
        _
    $region6: #{tpu_custom_call.1} parent=1 // loop_footer
      %s21 = sadd.s32 1, %s17
    $region7: #{tpu_custom_call.1} parent=1 // loop_footer_branch
      %16 = sbr.rel target = $region3
    $region8: #{tpu_custom_call.1} parent=1 // loop_exit
      _
    %649 = vsyncpa [#allocation4], 1
    %s650 = scalar_lea.sflag [#allocation4], 1
    %651 = vsyncpa %s650, 1

</llo_original>
